<compile_context>
chip_gen: v5e
topology: v5e:2x2
jax: 0.10.0
libtpu: 0.0.40
codegen_flags: <defaults>
</compile_context>

<pallas_src>
import functools
import math

import jax
import jax.numpy as jnp
from jax.experimental import pallas as pl
from jax.experimental.pallas import tpu as pltpu

_NEG_LARGE = -1e30  # finite stand-in for -inf (keeps online softmax NaN-free)


def _flash_sdpa_kernel(*refs, scale, has_bias, exp_dtype, approx_recip):
    if has_bias:
        q_ref, k_ref, v_ref, bias_ref, o_ref, m_sc, l_sc, acc_sc = refs
    else:
        q_ref, k_ref, v_ref, o_ref, m_sc, l_sc, acc_sc = refs
        bias_ref = None

    kv = pl.program_id(2)

    @pl.when(kv == 0)
    def _():
        m_sc[...] = jnp.full_like(m_sc, -jnp.inf)
        l_sc[...] = jnp.zeros_like(l_sc)
        acc_sc[...] = jnp.zeros_like(acc_sc)

    # Fold 1/sqrt(D) into q (hb*tq*D elements, cheaper than scaling the
    # hb*tq*tk score slab).  Scale is applied in f32 and rounded once back to
    # the MXU operand dtype.
    q = (q_ref[...].astype(jnp.float32) * scale).astype(q_ref.dtype)
    k = k_ref[...]
    v = v_ref[...]

    # Batched over hb heads; contracts D directly (no explicit transpose).
    # Operands stay in native dtype; MXU accumulates in f32.
    s = jnp.einsum("hqd,hkd->hqk", q, k, preferred_element_type=jnp.float32)

    if has_bias:
        # Additive mask bias (0 keep / -1e30 drop): one VPU add per score
        # instead of int load -> unpack -> compare -> select.
        s = s + bias_ref[...]

    m_prev = m_sc[...]
    m_new = jnp.maximum(m_prev, s.max(axis=-1, keepdims=True))
    alpha = jnp.exp(m_prev - m_new)                   # EUP
    p = jnp.exp((s - m_new).astype(exp_dtype))        # EUP (bf16 path on v6e/v7x)
    l_sc[...] = alpha * l_sc[...] + p.sum(axis=-1, keepdims=True, dtype=jnp.float32)
    acc_sc[...] = alpha * acc_sc[...] + jnp.einsum(
        "hqk,hkd->hqd", p.astype(v.dtype), v, preferred_element_type=jnp.float32)
    m_sc[...] = m_new

    @pl.when(kv == pl.num_programs(2) - 1)
    def _():
        # approx reciprocal (EUP slot) for low-precision dtypes; exact for f32.
        inv_l = pl.reciprocal(l_sc[...], approx=approx_recip)
        o_ref[...] = (acc_sc[...] * inv_l).astype(o_ref.dtype)


def _vmem_capacity_bytes():
    """Physical VMEM of the current TPU generation (fallback: 128 MiB)."""
    try:
        cap = int(pltpu.get_tpu_info().vmem_capacity_bytes)
        if cap > 0:
            return cap
    except Exception:
        pass
    return 128 * 1024 * 1024


def _sublane_multiple(dtype):
    """Sublane packing multiple: 8 (4-byte), 16 (2-byte), 32 (1-byte) dtypes."""
    return max(8, 32 // jnp.dtype(dtype).itemsize)


def _pick_seq_tile(n, cap, multiple):
    """Largest tile <= cap that divides n and is a multiple of `multiple` (else full n)."""
    if n <= cap:
        return n
    t = (cap // multiple) * multiple
    while t >= multiple:
        if n % t == 0:
            return t
        t -= multiple
    return n  # full extent is always legal


def _pick_head_block(H, tq, tk, D, itemsize, has_mask, budget):
    """Heads per grid step, with an honest per-head VMEM estimate."""
    d_pad = max(D, 128)  # lane padding of the f32 accumulator / out block
    per_head = (
        2 * (2 * tq * D + 2 * tk * D) * itemsize   # double-buffered q, out, k, v blocks
        + (2 * tq * 128 + tq * d_pad) * 4          # lane-padded f32 m, l, acc scratch
        + 3 * tq * tk * 4                          # f32 score slab + exp/temporary copies
    )
    if has_mask:
        per_head += 2 * tq * tk * 2                # double-buffered bf16 bias block (worst case)
    hb = max(1, min(H, budget // max(per_head, 1)))
    while H % hb:
        hb -= 1
    return hb


def _block_spec(block_shape, index_map, buffers=None):
    """BlockSpec, optionally with a deeper pipeline (pl.Buffered) when requested."""
    if buffers is not None and buffers > 2 and hasattr(pl, "Buffered"):
        try:
            return pl.BlockSpec(block_shape, index_map, pipeline_mode=pl.Buffered(buffers))
        except TypeError:  # older jax without pipeline_mode — fall back to double buffer
            pass
    return pl.BlockSpec(block_shape, index_map)


def scaled_dot_product_attention(q, k, v, mask=None, *, tq=None, tk=None, hb=None,
                                 approx_reciprocal=None, exp_in_bf16=None,
                                 kv_buffers=None):
    """Pallas flash-attention equivalent of ScaledDotProductAttention.forward.

    q: [B, H, Sq, D], k/v: [B, H, Sk, D]
    mask (optional): broadcastable to [B, H, Sq, Sk]; 0 => masked out
    returns: [B, H, Sq, D] in q.dtype

    Notes vs. the PyTorch reference:
      * Fully-masked query rows return a uniform average over keys (finite
        -1e30 bias instead of -inf) rather than NaN.
      * approx_reciprocal defaults to True for non-f32 inputs (EUP vrcp,
        ~1e-3 relative error on the softmax normalization).
      * exp_in_bf16 defaults to True for bf16 inputs (bf16 EUP exp on
        v6e/v7x); set False to keep softmax weights in f32.
      * kv_buffers (e.g. 3) is a tunable that deepens the K/V pipeline when
        VMEM headroom allows.
    """
    B, H, Sq, D = q.shape
    Sk = k.shape[-2]
    assert k.shape == (B, H, Sk, D) and v.shape == (B, H, Sk, D)
    BH = B * H
    scale = 1.0 / math.sqrt(D)
    has_mask = mask is not None

    # --- generation-aware VMEM budget / tile caps --------------------------
    vmem_cap = _vmem_capacity_bytes()
    small_vmem = vmem_cap <= 64 * 1024 * 1024              # v7x-class core (64 MiB)
    vmem_limit = min((vmem_cap * 3) // 4, 100 * 1024 * 1024)
    tq_cap = 256 if small_vmem else 512                    # bigger tq on 128 MiB parts
    tk_cap = 256 if small_vmem else 512                    #  -> halves K/V re-streaming

    if tq is None:
        tq = _pick_seq_tile(Sq, tq_cap, _sublane_multiple(q.dtype))
    if tk is None:
        # tk is the lane dim of the score slab: keep it a multiple of 128 (or full Sk).
        tk = _pick_seq_tile(Sk, tk_cap, 128)
    if hb is None:
        hb = _pick_head_block(H, tq, tk, D, q.dtype.itemsize, has_mask,
                              budget=int(vmem_limit * 0.55))
        # Megacore occupancy guard: keep >= 2 parallel grid steps so a second
        # TensorCore (v7x) is never left idle by over-aggressive head batching.
        while hb > 1 and (BH // hb) * (Sq // tq) < 2:
            hb -= 1
            while H % hb:
                hb -= 1
    assert Sq % tq == 0, f"tq={tq} must divide Sq={Sq}"
    assert Sk % tk == 0, f"tk={tk} must divide Sk={Sk}"
    assert H % hb == 0, f"hb={hb} must divide H={H}"

    if approx_reciprocal is None:
        approx_reciprocal = q.dtype != jnp.float32
    if exp_in_bf16 is None:
        exp_in_bf16 = q.dtype == jnp.bfloat16
    exp_dtype = jnp.bfloat16 if exp_in_bf16 else jnp.float32

    qf = q.reshape(BH, Sq, D)
    kf = k.reshape(BH, Sk, D)
    vf = v.reshape(BH, Sk, D)

    grid = (BH // hb, Sq // tq, Sk // tk)

    in_specs = [
        pl.BlockSpec((hb, tq, D), lambda i, qi, ki: (i, qi, 0)),
        _block_spec((hb, tk, D), lambda i, qi, ki: (i, ki, 0), kv_buffers),
        _block_spec((hb, tk, D), lambda i, qi, ki: (i, ki, 0), kv_buffers),
    ]
    inputs = [qf, kf, vf]

    if has_mask:
        m4 = jnp.asarray(mask)
        if m4.ndim < 4:
            m4 = m4.reshape((1,) * (4 - m4.ndim) + m4.shape)
        mb, mh, mq, mk = (int(d) for d in m4.shape)
        if mb not in (1, B) or mh not in (1, H) or mq not in (1, Sq) or mk not in (1, Sk):
            raise ValueError(f"mask shape {m4.shape} not broadcastable to {(B, H, Sq, Sk)}")
        # Additive bf16 bias (0 keep / -1e30 drop).  Broadcast dims (size-1
        # batch/head/Sq/Sk) are expressed in the BlockSpec index_map and never
        # materialized in HBM.
        bias = jnp.where(m4 == 0,
                         jnp.asarray(_NEG_LARGE, jnp.bfloat16),
                         jnp.asarray(0.0, jnp.bfloat16))
        hpb = H // hb                       # head-blocks per batch (hb | H)
        q_blk = tq if mq == Sq else 1
        k_blk = tk if mk == Sk else 1
        qidx = (lambda qi: qi) if mq == Sq else (lambda qi: 0)
        kidx = (lambda ki: ki) if mk == Sk else (lambda ki: 0)
        if mb == B and mh == H:                 # full per-head mask
            bias = bias.reshape(BH, mq, mk)
            lead_blk, lidx = hb, (lambda i: i)
        elif mh == H:                           # shared across batch, per-head
            bias = bias.reshape(H, mq, mk)
            lead_blk, lidx = hb, (lambda i: i % hpb)
        elif mb == B:                           # per-batch (e.g. key-padding mask)
            bias = bias.reshape(B, mq, mk)
            lead_blk, lidx = 1, (lambda i: i // hpb)
        else:                                   # fully shared
            bias = bias.reshape(1, mq, mk)
            lead_blk, lidx = 1, (lambda i: 0)
        in_specs.append(
            pl.BlockSpec((lead_blk, q_blk, k_blk),
                         lambda i, qi, ki: (lidx(i), qidx(qi), kidx(ki))))
        inputs.append(bias)

    out_spec = pl.BlockSpec((hb, tq, D), lambda i, qi, ki: (i, qi, 0))
    out_shape = jax.ShapeDtypeStruct((BH, Sq, D), q.dtype)

    kernel = functools.partial(
        _flash_sdpa_kernel,
        scale=scale,
        has_bias=has_mask,
        exp_dtype=exp_dtype,
        approx_recip=bool(approx_reciprocal),
    )

    out = pl.pallas_call(
        kernel,
        out_shape=out_shape,
        grid_spec=pltpu.PrefetchScalarGridSpec(
            num_scalar_prefetch=0,
            grid=grid,
            in_specs=in_specs,
            out_specs=out_spec,
            scratch_shapes=[
                pltpu.VMEM((hb, tq, 1), jnp.float32),   # running max m
                pltpu.VMEM((hb, tq, 1), jnp.float32),   # running sum l
                pltpu.VMEM((hb, tq, D), jnp.float32),   # output accumulator
            ],
        ),
        compiler_params=pltpu.CompilerParams(
            dimension_semantics=("parallel", "parallel", "arbitrary"),
            vmem_limit_bytes=int(vmem_limit),
        ),
    )(*inputs)

    return out.reshape(B, H, Sq, D)


def _reference(q, k, v, mask=None):
    qf, kf, vf = (x.astype(jnp.float32) for x in (q, k, v))
    scale = 1.0 / math.sqrt(q.shape[-1])
    scores = jnp.einsum("bhqd,bhkd->bhqk", qf, kf) * scale
    if mask is not None:
        scores = jnp.where(mask == 0, -jnp.inf, scores)
    attn = jax.nn.softmax(scores, axis=-1)
    return jnp.einsum("bhqk,bhkd->bhqd", attn, vf)


if __name__ == "__main__":
    key = jax.random.PRNGKey(0)
    kq, kk, kv_, km = jax.random.split(key, 4)

    B, H, S, D = 2, 4, 8, 32
    q = jax.random.normal(kq, (B, H, S, D), dtype=jnp.float32)
    k = jax.random.normal(kk, (B, H, S, D), dtype=jnp.float32)
    v = jax.random.normal(kv_, (B, H, S, D), dtype=jnp.float32)

    # ---- no-mask path (mask=None default of the PyTorch forward) ----
    out = jax.block_until_ready(scaled_dot_product_attention(q, k, v))
    ref = _reference(q, k, v)
    assert jnp.allclose(out, ref, atol=1e-5, rtol=1e-5), "no-mask mismatch"

    # ---- masked path (full per-head [B, H, Sq, Sk] mask) ----
    mask = (jax.random.uniform(km, (B, H, S, S)) > 0.3).astype(jnp.int32)
    mask = mask.at[..., 0].set(1)  # keep >=1 valid key per query row
    out_m = jax.block_until_ready(scaled_dot_product_attention(q, k, v, mask=mask))
    ref_m = _reference(q, k, v, mask=mask)
    assert jnp.allclose(out_m, ref_m, atol=1e-5, rtol=1e-5), "masked mismatch"

    # ---- broadcastable mask ([B, 1, Sq, Sk]) handled via index_map ----
    mask_b = mask[:, :1]
    out_b = jax.block_until_ready(scaled_dot_product_attention(q, k, v, mask=mask_b))
    ref_b = _reference(q, k, v, mask=mask_b)
    assert jnp.allclose(out_b, ref_b, atol=1e-5, rtol=1e-5), "broadcast-mask mismatch"

    # ---- key-padding mask ([B, 1, 1, Sk]); Sq dim stays size-1 in HBM ----
    mask_kp = (jax.random.uniform(km, (B, 1, 1, S)) > 0.3).astype(jnp.int32)
    mask_kp = mask_kp.at[..., 0].set(1)
    out_kp = jax.block_until_ready(scaled_dot_product_attention(q, k, v, mask=mask_kp))
    ref_kp = _reference(q, k, v, mask=mask_kp)
    assert jnp.allclose(out_kp, ref_kp, atol=1e-5, rtol=1e-5), "key-padding-mask mismatch"

    # ---- multi-kv-tile online-softmax path (lane-dense 128x128 tiles) ----
    S2 = 256
    q2 = jax.random.normal(kq, (B, H, S2, D), dtype=jnp.float32)
    k2 = jax.random.normal(kk, (B, H, S2, D), dtype=jnp.float32)
    v2 = jax.random.normal(kv_, (B, H, S2, D), dtype=jnp.float32)
    out2 = jax.block_until_ready(
        scaled_dot_product_attention(q2, k2, v2, tq=128, tk=128, hb=2))
    ref2 = _reference(q2, k2, v2)
    assert jnp.allclose(out2, ref2, atol=1e-4, rtol=1e-4), "multi-tile mismatch"

    # ---- bf16 operands stay native on the MXU (f32 accumulation, bf16 exp) ----
    qb, kb, vb = (x.astype(jnp.bfloat16) for x in (q, k, v))
    out_bf = jax.block_until_ready(scaled_dot_product_attention(qb, kb, vb))
    ref_bf = _reference(qb, kb, vb)
    assert jnp.allclose(out_bf.astype(jnp.float32), ref_bf, atol=5e-2, rtol=5e-2), \
        "bf16 mismatch"

    print("KERNEL_OK")
</pallas_src>

<mosaic_0001>
module attributes {stable_mosaic.version = 11 : i64} {
  func.func @_flash_sdpa_kernel(%arg0: i32, %arg1: i32, %arg2: i32, %arg3: memref<4x8x32xf32, #tpu.memory_space<vmem>>, %arg4: memref<4x8x32xf32, #tpu.memory_space<vmem>>, %arg5: memref<4x8x32xf32, #tpu.memory_space<vmem>>, %arg6: memref<4x8x32xf32, #tpu.memory_space<vmem>>, %arg7: memref<4x8x1xf32, #tpu.memory_space<vmem>>, %arg8: memref<4x8x1xf32, #tpu.memory_space<vmem>>, %arg9: memref<4x8x32xf32, #tpu.memory_space<vmem>>) attributes {dimension_semantics = [#tpu.dimension_semantics<parallel>, #tpu.dimension_semantics<parallel>, #tpu.dimension_semantics<arbitrary>], iteration_bounds = array<i64: 2, 1, 1>, scalar_prefetch = 0 : i64, scratch_operands = 3 : i64, tpu.core_type = #tpu.core_type<tc>, window_params = [{transform_indices = @transform_0, window_bounds = array<i64: 4, 8, 32>}, {transform_indices = @transform_1, window_bounds = array<i64: 4, 8, 32>}, {transform_indices = @transform_2, window_bounds = array<i64: 4, 8, 32>}, {transform_indices = @transform_3, window_bounds = array<i64: 4, 8, 32>}]} {
    %c0_i32 = arith.constant 0 : i32
    %0 = arith.cmpi eq, %arg2, %c0_i32 : i32
    %1 = arith.extui %0 : i1 to i32
    %c0_i32_0 = arith.constant 0 : i32
    %2 = arith.cmpi ne, %1, %c0_i32_0 : i32
    scf.if %2 {
      %cst_33 = arith.constant 0xFF800000 : f32
      %34 = vector.broadcast %cst_33 : f32 to vector<4x8x1xf32>
      %c0_34 = arith.constant 0 : index
      %c0_35 = arith.constant 0 : index
      %c0_36 = arith.constant 0 : index
      %35 = vector.load %arg7[%c0_34, %c0_35, %c0_36] : memref<4x8x1xf32, #tpu.memory_space<vmem>>, vector<4x8x1xf32>
      tpu.vector_store %arg7[%c0_34, %c0_35, %c0_36], %34 {strides = array<i32>} : memref<4x8x1xf32, #tpu.memory_space<vmem>>, vector<4x8x1xf32>,
      %cst_37 = arith.constant 0.000000e+00 : f32
      %36 = vector.broadcast %cst_37 : f32 to vector<4x8x1xf32>
      %c0_38 = arith.constant 0 : index
      %c0_39 = arith.constant 0 : index
      %c0_40 = arith.constant 0 : index
      %37 = vector.load %arg8[%c0_38, %c0_39, %c0_40] : memref<4x8x1xf32, #tpu.memory_space<vmem>>, vector<4x8x1xf32>
      tpu.vector_store %arg8[%c0_38, %c0_39, %c0_40], %36 {strides = array<i32>} : memref<4x8x1xf32, #tpu.memory_space<vmem>>, vector<4x8x1xf32>,
      %cst_41 = arith.constant 0.000000e+00 : f32
      %38 = vector.broadcast %cst_41 : f32 to vector<4x8x32xf32>
      %c0_42 = arith.constant 0 : index
      %c0_43 = arith.constant 0 : index
      %c0_44 = arith.constant 0 : index
      %39 = vector.load %arg9[%c0_42, %c0_43, %c0_44] : memref<4x8x32xf32, #tpu.memory_space<vmem>>, vector<4x8x32xf32>
      tpu.vector_store %arg9[%c0_42, %c0_43, %c0_44], %38 {strides = array<i32>} : memref<4x8x32xf32, #tpu.memory_space<vmem>>, vector<4x8x32xf32>,
    } else {
    }
    %c0 = arith.constant 0 : index
    %c0_1 = arith.constant 0 : index
    %c0_2 = arith.constant 0 : index
    %3 = vector.load %arg3[%c0, %c0_1, %c0_2] : memref<4x8x32xf32, #tpu.memory_space<vmem>>, vector<4x8x32xf32>
    %cst = arith.constant 0.176776692 : f32
    %4 = vector.broadcast %cst : f32 to vector<4x8x32xf32>
    %5 = arith.mulf %3, %4 : vector<4x8x32xf32>
    %c0_3 = arith.constant 0 : index
    %c0_4 = arith.constant 0 : index
    %c0_5 = arith.constant 0 : index
    %6 = vector.load %arg4[%c0_3, %c0_4, %c0_5] : memref<4x8x32xf32, #tpu.memory_space<vmem>>, vector<4x8x32xf32>
    %c0_6 = arith.constant 0 : index
    %c0_7 = arith.constant 0 : index
    %c0_8 = arith.constant 0 : index
    %7 = vector.load %arg5[%c0_6, %c0_7, %c0_8] : memref<4x8x32xf32, #tpu.memory_space<vmem>>, vector<4x8x32xf32>
    "tpu.trace_start"() <{level = 10 : i32, message = "hqd,hkd->hqk"}> : () -> ()
    %cst_9 = arith.constant dense<0.000000e+00> : vector<4x8x8xf32>
    %8 = tpu.matmul %5, %6, %cst_9 {dimension_numbers = #tpu.dot_dimension_numbers<[2], [2], [1], [1], [0, 0, 0, 1, 1, 1], [0], [0]>} : vector<4x8x32xf32>, vector<4x8x32xf32>, vector<4x8x8xf32> -> vector<4x8x8xf32>
    "tpu.trace_stop"() : () -> ()
    %c0_10 = arith.constant 0 : index
    %c0_11 = arith.constant 0 : index
    %c0_12 = arith.constant 0 : index
    %9 = vector.load %arg7[%c0_10, %c0_11, %c0_12] : memref<4x8x1xf32, #tpu.memory_space<vmem>>, vector<4x8x1xf32>
    %cst_13 = arith.constant dense<0xFF800000> : vector<4x8xf32>
    %10 = vector.multi_reduction <maximumf>, %8, %cst_13 [2] : vector<4x8x8xf32> to vector<4x8xf32>
    %11 = vector.shape_cast %10 : vector<4x8xf32> to vector<4x8x1xf32>
    %12 = arith.maximumf %9, %11 : vector<4x8x1xf32>
    %13 = arith.subf %9, %12 : vector<4x8x1xf32>
    %14 = math.exp %13 : vector<4x8x1xf32>
    %15 = vector.broadcast %12 : vector<4x8x1xf32> to vector<4x8x8xf32>
    %16 = arith.subf %8, %15 : vector<4x8x8xf32>
    %17 = math.exp %16 : vector<4x8x8xf32>
    %c0_14 = arith.constant 0 : index
    %c0_15 = arith.constant 0 : index
    %c0_16 = arith.constant 0 : index
    %18 = vector.load %arg8[%c0_14, %c0_15, %c0_16] : memref<4x8x1xf32, #tpu.memory_space<vmem>>, vector<4x8x1xf32>
    %19 = arith.mulf %14, %18 : vector<4x8x1xf32>
    %cst_17 = arith.constant dense<0.000000e+00> : vector<4x8xf32>
    %20 = vector.multi_reduction <add>, %17, %cst_17 [2] : vector<4x8x8xf32> to vector<4x8xf32>
    %21 = vector.shape_cast %20 : vector<4x8xf32> to vector<4x8x1xf32>
    %22 = arith.addf %19, %21 : vector<4x8x1xf32>
    %c0_18 = arith.constant 0 : index
    %c0_19 = arith.constant 0 : index
    %c0_20 = arith.constant 0 : index
    %23 = vector.load %arg8[%c0_18, %c0_19, %c0_20] : memref<4x8x1xf32, #tpu.memory_space<vmem>>, vector<4x8x1xf32>
    tpu.vector_store %arg8[%c0_18, %c0_19, %c0_20], %22 {strides = array<i32>} : memref<4x8x1xf32, #tpu.memory_space<vmem>>, vector<4x8x1xf32>,
    %c0_21 = arith.constant 0 : index
    %c0_22 = arith.constant 0 : index
    %c0_23 = arith.constant 0 : index
    %24 = vector.load %arg9[%c0_21, %c0_22, %c0_23] : memref<4x8x32xf32, #tpu.memory_space<vmem>>, vector<4x8x32xf32>
    %25 = vector.broadcast %14 : vector<4x8x1xf32> to vector<4x8x32xf32>
    %26 = arith.mulf %25, %24 : vector<4x8x32xf32>
    "tpu.trace_start"() <{level = 10 : i32, message = "hqk,hkd->hqd"}> : () -> ()
    %cst_24 = arith.constant dense<0.000000e+00> : vector<4x8x32xf32>
    %27 = tpu.matmul %17, %7, %cst_24 {dimension_numbers = #tpu.dot_dimension_numbers<[2], [1], [1], [2], [0, 0, 0, 1, 1, 2], [0], [0]>} : vector<4x8x8xf32>, vector<4x8x32xf32>, vector<4x8x32xf32> -> vector<4x8x32xf32>
    "tpu.trace_stop"() : () -> ()
    %28 = arith.addf %26, %27 : vector<4x8x32xf32>
    %c0_25 = arith.constant 0 : index
    %c0_26 = arith.constant 0 : index
    %c0_27 = arith.constant 0 : index
    %29 = vector.load %arg9[%c0_25, %c0_26, %c0_27] : memref<4x8x32xf32, #tpu.memory_space<vmem>>, vector<4x8x32xf32>
    tpu.vector_store %arg9[%c0_25, %c0_26, %c0_27], %28 {strides = array<i32>} : memref<4x8x32xf32, #tpu.memory_space<vmem>>, vector<4x8x32xf32>,
    %c0_28 = arith.constant 0 : index
    %c0_29 = arith.constant 0 : index
    %c0_30 = arith.constant 0 : index
    %30 = vector.load %arg7[%c0_28, %c0_29, %c0_30] : memref<4x8x1xf32, #tpu.memory_space<vmem>>, vector<4x8x1xf32>
    tpu.vector_store %arg7[%c0_28, %c0_29, %c0_30], %12 {strides = array<i32>} : memref<4x8x1xf32, #tpu.memory_space<vmem>>, vector<4x8x1xf32>,
    %c0_i32_31 = arith.constant 0 : i32
    %31 = arith.cmpi eq, %arg2, %c0_i32_31 : i32
    %32 = arith.extui %31 : i1 to i32
    %c0_i32_32 = arith.constant 0 : i32
    %33 = arith.cmpi ne, %32, %c0_i32_32 : i32
    scf.if %33 {
      %c0_33 = arith.constant 0 : index
      %c0_34 = arith.constant 0 : index
      %c0_35 = arith.constant 0 : index
      %34 = vector.load %arg8[%c0_33, %c0_34, %c0_35] : memref<4x8x1xf32, #tpu.memory_space<vmem>>, vector<4x8x1xf32>
      %35 = tpu.reciprocal %34 : vector<4x8x1xf32> -> vector<4x8x1xf32>
      %c0_36 = arith.constant 0 : index
      %c0_37 = arith.constant 0 : index
      %c0_38 = arith.constant 0 : index
      %36 = vector.load %arg9[%c0_36, %c0_37, %c0_38] : memref<4x8x32xf32, #tpu.memory_space<vmem>>, vector<4x8x32xf32>
      %37 = vector.broadcast %35 : vector<4x8x1xf32> to vector<4x8x32xf32>
      %38 = arith.mulf %36, %37 : vector<4x8x32xf32>
      %c0_39 = arith.constant 0 : index
      %c0_40 = arith.constant 0 : index
      %c0_41 = arith.constant 0 : index
      %39 = vector.load %arg6[%c0_39, %c0_40, %c0_41] : memref<4x8x32xf32, #tpu.memory_space<vmem>>, vector<4x8x32xf32>
      tpu.vector_store %arg6[%c0_39, %c0_40, %c0_41], %38 {strides = array<i32>} : memref<4x8x32xf32, #tpu.memory_space<vmem>>, vector<4x8x32xf32>,
    } else {
    }
    return
  }
  func.func @transform_0(%arg0: i32, %arg1: i32, %arg2: i32) -> (i32, i32, i32) {
    %c0_i32 = arith.constant 0 : i32
    %c0_i32_0 = arith.constant 0 : i32
    return %arg0, %arg1, %c0_i32 : i32, i32, i32
  }
  func.func @transform_1(%arg0: i32, %arg1: i32, %arg2: i32) -> (i32, i32, i32) {
    %c0_i32 = arith.constant 0 : i32
    %c0_i32_0 = arith.constant 0 : i32
    return %arg0, %arg2, %c0_i32 : i32, i32, i32
  }
  func.func @transform_2(%arg0: i32, %arg1: i32, %arg2: i32) -> (i32, i32, i32) {
    %c0_i32 = arith.constant 0 : i32
    %c0_i32_0 = arith.constant 0 : i32
    return %arg0, %arg2, %c0_i32 : i32, i32, i32
  }
  func.func @transform_3(%arg0: i32, %arg1: i32, %arg2: i32) -> (i32, i32, i32) {
    %c0_i32 = arith.constant 0 : i32
    %c0_i32_0 = arith.constant 0 : i32
    return %arg0, %arg1, %c0_i32 : i32, i32, i32
  }
}

</mosaic_0001>

<llo_original>
// kernel: tpu_custom_call.1
$region0: #{tpu_custom_call.1}
  #allocation0 [shape = 'u32[]', space=smem, size = 0x4, offset = 0x4, fixed_abs, tag = 'smem constant byte address 0x4 - core index']
  #allocation1 [shape = 'u32[72,128]{1,0:T(1,128)}', space=vmem, size = 0x9000, scoped, tag = 'internal scratch']
  #allocation2 [shape = 'f32[4,8,1]{2,1,0:T(8,128)}', space=vmem, size = 0x4000, scoped, tag = 'scratch operand']
  #allocation3 [shape = 'f32[4,8,1]{2,1,0:T(8,128)}', space=vmem, size = 0x4000, scoped, tag = 'scratch operand']
  #allocation4 [shape = 'f32[4,8,32]{2,1,0:T(8,128)}', space=vmem, size = 0x4000, scoped, tag = 'scratch operand']
  %s0 = inlined_call_operand.hbm [shape: f32[8,8,32], index: 0, kind: input, shape index: {}]
  %s1 = inlined_call_operand.hbm [shape: f32[8,8,32], index: 1, kind: input, shape index: {}]
  %s2 = inlined_call_operand.hbm [shape: f32[8,8,32], index: 2, kind: input, shape index: {}]
  %s3 = inlined_call_operand.hbm [shape: f32[8,8,32], index: 3, kind: output, shape index: {}]
  %s4 = sld [smem:[#allocation0]]
  $region65: #{tpu_custom_call.1} parent=0
    _
  %s6 = ssub.s32 1, %s4
  %s7 = scalar_select 0, %s6, %s4
  $region1: #{tpu_custom_call.1} parent=0
    #allocation5 [shape = 'u8[32768]{0}', space=vmem, size = 0x8000, scoped, tag = 'input window, operand 0']
    #allocation6 [shape = 's32[2]{0}', space=sflag, size = 0x8, scoped, tag = 'scoped memory for tpu_custom_call.1']
    #allocation7 [shape = 's32[2]{0}', space=sflag, size = 0x8, scoped, tag = 'scoped memory for tpu_custom_call.1']
    #allocation8 [shape = 'u8[32768]{0}', space=vmem, size = 0x8000, scoped, tag = 'input window, operand 1']
    #allocation9 [shape = 's32[2]{0}', space=sflag, size = 0x8, scoped, tag = 'scoped memory for tpu_custom_call.1']
    #allocation10 [shape = 'u8[32768]{0}', space=vmem, size = 0x8000, scoped, tag = 'input window, operand 2']
    #allocation11 [shape = 'u8[32768]{0}', space=vmem, size = 0x8000, scoped, tag = 'output window, operand 0']
    %8 = vsyncpa [#allocation6], 0
    %s9 = scalar_lea.sflag [#allocation6], 1
    %10 = vsyncpa %s9, 0
    %11 = vsyncpa [#allocation9], 0
    %s12 = scalar_lea.sflag [#allocation9], 1
    %13 = vsyncpa %s12, 0
    %14 = vsyncpa [#allocation7], 0
    %s15 = scalar_lea.sflag [#allocation7], 1
    %16 = vsyncpa %s15, 0
    loop: start=0, step=1, limit=4
    $region2: #{tpu_custom_call.1} parent=1 // loop_pre_header
      _
    $region3: #{tpu_custom_call.1} parent=1 // loop_header
      %s18 = sphi 0, %s22
      %p19 = scmp.ge.s32.totalorder %s18, 4
      %s25 = sphi 0, %s44
      %s26 = sphi 0, %s40
      %s27 = sphi 0, %s36
      %s28 = sphi 0, %s25
      %s29 = sphi 0, %s26
      %s30 = sphi 0, %s27
      %s31 = sphi 0, %s28
      %s32 = sphi 0, %s29
      %s33 = sphi 0, %s30
      %s49 = sphi 0, %s51
      %s52 = sphi 0, %s49
      %s53 = sphi 0, %s52
      %s69 = sphi 0, %s53
      %s77 = sphi 0, %s79
      %s80 = sphi 0, %s77
      %s81 = sphi 0, %s80
      %s97 = sphi 0, %s81
      %s105 = sphi 0, %s107
      %s108 = sphi 0, %s105
      %s109 = sphi 0, %s108
      %s125 = sphi 0, %s109
      %s133 = sphi 0, %s135
      %s136 = sphi 0, %s133
      %s137 = sphi 0, %s136
      %s153 = sphi 0, %s137
    $region4: #{tpu_custom_call.1} parent=1 // loop_header_branch
      %21 = sbr.rel (%p19) target = $region8
    $region5: #{tpu_custom_call.1} parent=1 // loop_body
      %s23 = ssub.s32 %s18, 1
      %s24 = ssub.s32 %s18, 2
      %s34 = sadd.s32 1, %s27
      %p35 = scmp.ge.s32.totalorder %s34, 1
      %s36 = scalar_select %p35, 0, %s34
      %s37 = sadd.s32 1, %s26
      %s38 = scalar_select %p35, %s37, %s26
      %p39 = scmp.ge.s32.totalorder %s38, 1
      %s40 = scalar_select %p39, 0, %s38
      %s41 = sadd.s32 1, %s25
      %s42 = scalar_select %p39, %s41, %s25
      %p43 = scmp.ge.s32.totalorder %s42, 2
      %s44 = scalar_select %p43, 0, %s42
      %s45 = ssub.s32 %s25, %s44
      %s46 = ssub.s32 %s26, %s40
      %s47 = sor.u32 %s45, %s46
      %p48 = scmp.eq.s32.totalorder %s47, 0
      %s50 = sadd.s32 %s49, 1
      %s51 = scalar_select %p48, %s49, %s50
      %p54 = pneg %p48
      %p55 = scmp.eq.s32.totalorder %s18, 1
      %p56 = por %p54, %p55
      %p57 = scmp.ne.s32.totalorder %s49, %s52
      %p58 = scmp.eq.s32.totalorder %s18, 0
      %p59 = por %p57, %p58
      %p60 = scmp.ne.s32.totalorder %s49, %s52
      %p61 = scmp.eq.s32.totalorder %s23, 1
      %p62 = por %p60, %p61
      %p63 = scmp.ne.s32.totalorder %s52, %s53
      %p64 = scmp.eq.s32.totalorder %s23, 0
      %p65 = por %p63, %p64
      %p66 = scmp.ne.s32.totalorder %s52, %s53
      %p67 = scmp.eq.s32.totalorder %s24, 1
      %p68 = por %p66, %p67
      %p70 = scmp.ne.s32.totalorder %s53, %s69
      %p71 = scmp.eq.s32.totalorder %s24, 0
      %p72 = por %p70, %p71
      %s73 = ssub.s32 %s25, %s44
      %s74 = ssub.s32 %s27, %s36
      %s75 = sor.u32 %s73, %s74
      %p76 = scmp.eq.s32.totalorder %s75, 0
      %s78 = sadd.s32 %s77, 1
      %s79 = scalar_select %p76, %s77, %s78
      %p82 = pneg %p76
      %p83 = scmp.eq.s32.totalorder %s18, 1
      %p84 = por %p82, %p83
      %p85 = scmp.ne.s32.totalorder %s77, %s80
      %p86 = scmp.eq.s32.totalorder %s18, 0
      %p87 = por %p85, %p86
      %p88 = scmp.ne.s32.totalorder %s77, %s80
      %p89 = scmp.eq.s32.totalorder %s23, 1
      %p90 = por %p88, %p89
      %p91 = scmp.ne.s32.totalorder %s80, %s81
      %p92 = scmp.eq.s32.totalorder %s23, 0
      %p93 = por %p91, %p92
      %p94 = scmp.ne.s32.totalorder %s80, %s81
      %p95 = scmp.eq.s32.totalorder %s24, 1
      %p96 = por %p94, %p95
      %p98 = scmp.ne.s32.totalorder %s81, %s97
      %p99 = scmp.eq.s32.totalorder %s24, 0
      %p100 = por %p98, %p99
      %s101 = ssub.s32 %s25, %s44
      %s102 = ssub.s32 %s27, %s36
      %s103 = sor.u32 %s101, %s102
      %p104 = scmp.eq.s32.totalorder %s103, 0
      %s106 = sadd.s32 %s105, 1
      %s107 = scalar_select %p104, %s105, %s106
      %p110 = pneg %p104
      %p111 = scmp.eq.s32.totalorder %s18, 1
      %p112 = por %p110, %p111
      %p113 = scmp.ne.s32.totalorder %s105, %s108
      %p114 = scmp.eq.s32.totalorder %s18, 0
      %p115 = por %p113, %p114
      %p116 = scmp.ne.s32.totalorder %s105, %s108
      %p117 = scmp.eq.s32.totalorder %s23, 1
      %p118 = por %p116, %p117
      %p119 = scmp.ne.s32.totalorder %s108, %s109
      %p120 = scmp.eq.s32.totalorder %s23, 0
      %p121 = por %p119, %p120
      %p122 = scmp.ne.s32.totalorder %s108, %s109
      %p123 = scmp.eq.s32.totalorder %s24, 1
      %p124 = por %p122, %p123
      %p126 = scmp.ne.s32.totalorder %s109, %s125
      %p127 = scmp.eq.s32.totalorder %s24, 0
      %p128 = por %p126, %p127
      %s129 = ssub.s32 %s25, %s44
      %s130 = ssub.s32 %s26, %s40
      %s131 = sor.u32 %s129, %s130
      %p132 = scmp.eq.s32.totalorder %s131, 0
      %s134 = sadd.s32 %s133, 1
      %s135 = scalar_select %p132, %s133, %s134
      %p138 = pneg %p132
      %p139 = scmp.eq.s32.totalorder %s18, 1
      %p140 = por %p138, %p139
      %p141 = scmp.ne.s32.totalorder %s133, %s136
      %p142 = scmp.eq.s32.totalorder %s18, 0
      %p143 = por %p141, %p142
      %p144 = scmp.ne.s32.totalorder %s133, %s136
      %p145 = scmp.eq.s32.totalorder %s23, 1
      %p146 = por %p144, %p145
      %p147 = scmp.ne.s32.totalorder %s136, %s137
      %p148 = scmp.eq.s32.totalorder %s23, 0
      %p149 = por %p147, %p148
      %p150 = scmp.ne.s32.totalorder %s136, %s137
      %p151 = scmp.eq.s32.totalorder %s24, 1
      %p152 = por %p150, %p151
      %p154 = scmp.ne.s32.totalorder %s137, %s153
      %p155 = scmp.eq.s32.totalorder %s24, 0
      %p156 = por %p154, %p155
      %p157 = scmp.le.s32.totalorder 1, %s18
      %p158 = scmp.lt.s32.totalorder %s18, 3
      %p159 = pnand %p157, %p158
      %p160 = pneg %p159
      // Predicated region
      $region9: #{tpu_custom_call.1} parent=5 // pred_check
        _
      $region10: #{tpu_custom_call.1} parent=5 // pred_check_branch
        %162 = sbr.rel (%p159) target = $region12
      $region11: #{tpu_custom_call.1} parent=5 // pred_region
        %s163 = ssub.s32 %s18, 1
      $region12: #{tpu_custom_call.1} parent=5 // pred_fallthru
        _
      %p164 = scmp.lt.s32.totalorder %s18, 2
      // Predicated region
      $region13: #{tpu_custom_call.1} parent=5 // pred_check
        %p165 = pneg %p164
      $region14: #{tpu_custom_call.1} parent=5 // pred_check_branch
        %167 = sbr.rel (%p165) target = $region16
      $region15: #{tpu_custom_call.1} parent=5 // pred_region
        // Predicated region
        $region17: #{tpu_custom_call.1} parent=15 // pred_check
          %p168 = pneg %p59
        $region18: #{tpu_custom_call.1} parent=15 // pred_check_branch
          %170 = sbr.rel (%p168) target = $region20
        $region19: #{tpu_custom_call.1} parent=15 // pred_region
          %s171 = sand.u32 %s49, 1
          %s172 = scalar_lea.sflag [#allocation6], %s171
          %s173 = sand.u32 %s49, 1
          %s174 = smul.addr %s173, 32
          %s175 = scalar_lea.vmem [#allocation5], %s174
          %s176 = smul.u32 4, %s25
          %178 = vsyncadd %s172, 0
          %s179 = sadd.s32 %s26, %s176
          %s180 = smul.addr %s179, 8
          %s181 = scalar_lea.hbm %s0, %s180
          %s182 = sshll.u32 %s181, 4
          %s183 = int_to_ptr.hbm [resolvable:$true] %s182
          %s184 = sshll.u32 %s175, 4
          %s185 = int_to_ptr.vmem [resolvable:$true] %s184
          %190 = dma.hbm_to_vmem [thread:$0]  %s183, 512, %s185, %s172, 128, 128, 8
        $region20: #{tpu_custom_call.1} parent=15 // pred_fallthru
          _
        // Predicated region
        $region21: #{tpu_custom_call.1} parent=15 // pred_check
          %p191 = pneg %p87
        $region22: #{tpu_custom_call.1} parent=15 // pred_check_branch
          %193 = sbr.rel (%p191) target = $region24
        $region23: #{tpu_custom_call.1} parent=15 // pred_region
          %s194 = sand.u32 %s18, 1
          %s195 = scalar_lea.sflag [#allocation9], %s194
          %s196 = sand.u32 %s77, 1
          %s197 = smul.addr %s196, 32
          %s198 = scalar_lea.vmem [#allocation8], %s197
          %s199 = smul.u32 4, %s25
          %201 = vsyncadd %s195, 0
          %s202 = sadd.s32 %s27, %s199
          %s203 = smul.addr %s202, 8
          %s204 = scalar_lea.hbm %s1, %s203
          %s205 = sshll.u32 %s204, 4
          %s206 = int_to_ptr.hbm [resolvable:$true] %s205
          %s207 = sshll.u32 %s198, 4
          %s208 = int_to_ptr.vmem [resolvable:$true] %s207
          %213 = dma.hbm_to_vmem [thread:$0]  %s206, 512, %s208, %s195, 128, 128, 8
        $region24: #{tpu_custom_call.1} parent=15 // pred_fallthru
          _
        // Predicated region
        $region25: #{tpu_custom_call.1} parent=15 // pred_check
          %p214 = pneg %p115
        $region26: #{tpu_custom_call.1} parent=15 // pred_check_branch
          %216 = sbr.rel (%p214) target = $region28
        $region27: #{tpu_custom_call.1} parent=15 // pred_region
          %s217 = sand.u32 %s18, 1
          %s218 = scalar_lea.sflag [#allocation9], %s217
          %s219 = sand.u32 %s105, 1
          %s220 = smul.addr %s219, 32
          %s221 = scalar_lea.vmem [#allocation10], %s220
          %s222 = smul.u32 4, %s25
          %224 = vsyncadd %s218, 0
          %s225 = sadd.s32 %s27, %s222
          %s226 = smul.addr %s225, 8
          %s227 = scalar_lea.hbm %s2, %s226
          %s228 = sshll.u32 %s227, 4
          %s229 = int_to_ptr.hbm [resolvable:$true] %s228
          %s230 = sshll.u32 %s221, 4
          %s231 = int_to_ptr.vmem [resolvable:$true] %s230
          %236 = dma.hbm_to_vmem [thread:$0]  %s229, 512, %s231, %s218, 128, 128, 8
        $region28: #{tpu_custom_call.1} parent=15 // pred_fallthru
          _
      $region16: #{tpu_custom_call.1} parent=5 // pred_fallthru
        _
      %p237 = scmp.le.s32.totalorder 1, %s18
      %p238 = scmp.lt.s32.totalorder %s18, 3
      %p239 = pnand %p237, %p238
      %p240 = pneg %p239
      // Predicated region
      $region29: #{tpu_custom_call.1} parent=5 // pred_check
        _
      $region30: #{tpu_custom_call.1} parent=5 // pred_check_branch
        %242 = sbr.rel (%p239) target = $region32
      $region31: #{tpu_custom_call.1} parent=5 // pred_region
        %s243 = ssub.s32 %s18, 1
        %s244 = sand.u32 %s52, 1
        %s245 = scalar_lea.sflag [#allocation6], %s244
        %s246 = sand.u32 %s52, 1
        %s247 = smul.addr %s246, 32
        %s248 = scalar_lea.vmem [#allocation5], %s247
        // Predicated region
        $region33: #{tpu_custom_call.1} parent=31 // pred_check
          %p249 = pneg %p65
        $region34: #{tpu_custom_call.1} parent=31 // pred_check_branch
          %251 = sbr.rel (%p249) target = $region36
        $region35: #{tpu_custom_call.1} parent=31 // pred_region
          %253 = dma.done %s245, 512
        $region36: #{tpu_custom_call.1} parent=31 // pred_fallthru
          _
        %s254 = sand.u32 %s23, 1
        %s255 = scalar_lea.sflag [#allocation9], %s254
        %s256 = sand.u32 %s80, 1
        %s257 = smul.addr %s256, 32
        %s258 = scalar_lea.vmem [#allocation8], %s257
        // Predicated region
        $region37: #{tpu_custom_call.1} parent=31 // pred_check
          %p259 = pneg %p93
        $region38: #{tpu_custom_call.1} parent=31 // pred_check_branch
          %261 = sbr.rel (%p259) target = $region40
        $region39: #{tpu_custom_call.1} parent=31 // pred_region
          %263 = dma.done %s255, 512
        $region40: #{tpu_custom_call.1} parent=31 // pred_fallthru
          _
        %s264 = sand.u32 %s23, 1
        %s265 = scalar_lea.sflag [#allocation9], %s264
        %s266 = sand.u32 %s108, 1
        %s267 = smul.addr %s266, 32
        %s268 = scalar_lea.vmem [#allocation10], %s267
        // Predicated region
        $region41: #{tpu_custom_call.1} parent=31 // pred_check
          %p269 = pneg %p121
        $region42: #{tpu_custom_call.1} parent=31 // pred_check_branch
          %271 = sbr.rel (%p269) target = $region44
        $region43: #{tpu_custom_call.1} parent=31 // pred_region
          %273 = dma.done %s265, 512
        $region44: #{tpu_custom_call.1} parent=31 // pred_fallthru
          _
        %s274 = sand.u32 %s52, 1
        %s275 = scalar_lea.sflag [#allocation6], %s274
        %s276 = sand.u32 %s52, 1
        %s277 = smul.addr %s276, 32
        %s278 = scalar_lea.vmem [#allocation5], %s277
        %p279 = pneg %p65
        %p280 = pneg %p62
        %s281 = sand.u32 %s23, 1
        %s282 = scalar_lea.sflag [#allocation9], %s281
        %s283 = sand.u32 %s80, 1
        %s284 = smul.addr %s283, 32
        %s285 = scalar_lea.vmem [#allocation8], %s284
        %p286 = pneg %p93
        %p287 = pneg %p90
        %s288 = sand.u32 %s23, 1
        %s289 = scalar_lea.sflag [#allocation9], %s288
        %s290 = sand.u32 %s108, 1
        %s291 = smul.addr %s290, 32
        %s292 = scalar_lea.vmem [#allocation10], %s291
        %p293 = pneg %p121
        %p294 = pneg %p118
        %p295 = pneg %p149
        %p296 = pneg %p146
        %s297 = sand.u32 %s136, 1
        %s298 = scalar_lea.sflag [#allocation7], %s297
        %s299 = sand.u32 %s136, 1
        %s300 = smul.addr %s299, 32
        %s301 = scalar_lea.vmem [#allocation11], %s300
        %s302 = smul.u32 4, %s28
        %s303 = smul.u32 4, %s28
        %s304 = smul.u32 4, %s28
        %s305 = smul.u32 4, %s28
        %p306 = scmp.eq.s32.totalorder %s30, 0
        // Predicated region
        $region45: #{tpu_custom_call.1} parent=31 // pred_check
          %p307 = pneg %p306
        $region46: #{tpu_custom_call.1} parent=31 // pred_check_branch
          %309 = sbr.rel (%p307) target = $region48
        $region47: #{tpu_custom_call.1} parent=31 // pred_region
          %vm310 = vcmask 7168
          %311 = vst.msk [vmem:[#allocation2] sm:$0xff] %vm310, -inf
          %312 = vst.msk [vmem:[#allocation2 + $0x8] sm:$0xff] %vm310, -inf
          %313 = vst.msk [vmem:[#allocation2 + $0x10] sm:$0xff] %vm310, -inf
          %314 = vst.msk [vmem:[#allocation2 + $0x18] sm:$0xff] %vm310, -inf
          %315 = vst.msk [vmem:[#allocation3] sm:$0xff] %vm310, 0.0
          %316 = vst.msk [vmem:[#allocation3 + $0x8] sm:$0xff] %vm310, 0.0
          %317 = vst.msk [vmem:[#allocation3 + $0x10] sm:$0xff] %vm310, 0.0
          %318 = vst.msk [vmem:[#allocation3 + $0x18] sm:$0xff] %vm310, 0.0
          %vm319 = vcmask 261120
          %320 = vst.msk [vmem:[#allocation4] sm:$0xff] %vm319, 0.0
          %321 = vst.msk [vmem:[#allocation4 + $0x8] sm:$0xff] %vm319, 0.0
          %322 = vst.msk [vmem:[#allocation4 + $0x10] sm:$0xff] %vm319, 0.0
          %323 = vst.msk [vmem:[#allocation4 + $0x18] sm:$0xff] %vm319, 0.0
        $region48: #{tpu_custom_call.1} parent=31 // pred_fallthru
          _
        %v324 = vld [vmem:[%s248] sm:$0xff]
        %v325 = vld [vmem:[%s248 + $0x8] sm:$0xff]
        %v326 = vld [vmem:[%s248 + $0x10] sm:$0xff]
        %v327 = vld [vmem:[%s248 + $0x18] sm:$0xff]
        %v328 = vmul.f32 %v324, 0.17677669
        %v329 = vmul.f32 %v325, 0.17677669
        %v330 = vmul.f32 %v326, 0.17677669
        %v331 = vmul.f32 %v327, 0.17677669
        %v332 = vld [vmem:[%s258] sm:$0xff]
        %v333 = vld [vmem:[%s258 + $0x8] sm:$0xff]
        %v334 = vld [vmem:[%s258 + $0x10] sm:$0xff]
        %v335 = vld [vmem:[%s258 + $0x18] sm:$0xff]
        %v336 = vld [vmem:[%s268] sm:$0xff]
        %v337 = vld [vmem:[%s268 + $0x8] sm:$0xff]
        %v338 = vld [vmem:[%s268 + $0x10] sm:$0xff]
        %v339 = vld [vmem:[%s268 + $0x18] sm:$0xff]
        %vm340 = vcmask 261120
        %v342 = vsel %vm340, %v328, 0
        %v345 = vsel %vm340, %v332, 0
        %347 = vmatpush.xpose.msra.mxu0 0.0
        %348 = vmatpush.xpose.msra.mxu0 0.0
        %349 = vmatpush.xpose.msra.mxu0 0.0
        %350 = vmatpush.xpose.msra.mxu0 0.0
        %351 = vmatpush.xpose.msra.mxu0 0.0
        %352 = vmatpush.xpose.msra.mxu0 0.0
        %353 = vmatpush.xpose.msra.mxu0 0.0
        %354 = vmatpush.xpose.msra.mxu0 0.0
        %355 = vmatpush.xpose.msra.mxu0 0.0
        %356 = vmatpush.xpose.msra.mxu0 0.0
        %357 = vmatpush.xpose.msra.mxu0 0.0
        %358 = vmatpush.xpose.msra.mxu0 0.0
        %359 = vmatpush.xpose.msra.mxu0 0.0
        %360 = vmatpush.xpose.msra.mxu0 0.0
        %361 = vmatpush.xpose.msra.mxu0 0.0
        %362 = vmatpush.xpose.msra.mxu0 %v345
        %363 = vmatmul.f32.gmra.mxu0 %v342
        %v364 = vpop.f32.mrf.mxu0
        %v365 = vadd.f32 0.0, %v364
        %366 = vdwg.mxu0
        %v368 = vsel %vm340, %v329, 0
        %v371 = vsel %vm340, %v333, 0
        %373 = vmatpush.xpose.msra.mxu0 0.0
        %374 = vmatpush.xpose.msra.mxu0 0.0
        %375 = vmatpush.xpose.msra.mxu0 0.0
        %376 = vmatpush.xpose.msra.mxu0 0.0
        %377 = vmatpush.xpose.msra.mxu0 0.0
        %378 = vmatpush.xpose.msra.mxu0 0.0
        %379 = vmatpush.xpose.msra.mxu0 0.0
        %380 = vmatpush.xpose.msra.mxu0 0.0
        %381 = vmatpush.xpose.msra.mxu0 0.0
        %382 = vmatpush.xpose.msra.mxu0 0.0
        %383 = vmatpush.xpose.msra.mxu0 0.0
        %384 = vmatpush.xpose.msra.mxu0 0.0
        %385 = vmatpush.xpose.msra.mxu0 0.0
        %386 = vmatpush.xpose.msra.mxu0 0.0
        %387 = vmatpush.xpose.msra.mxu0 0.0
        %388 = vmatpush.xpose.msra.mxu0 %v371
        %389 = vmatmul.f32.gmra.mxu0 %v368
        %v390 = vpop.f32.mrf.mxu0
        %v391 = vadd.f32 0.0, %v390
        %392 = vdwg.mxu0
        %v394 = vsel %vm340, %v330, 0
        %v397 = vsel %vm340, %v334, 0
        %399 = vmatpush.xpose.msra.mxu0 0.0
        %400 = vmatpush.xpose.msra.mxu0 0.0
        %401 = vmatpush.xpose.msra.mxu0 0.0
        %402 = vmatpush.xpose.msra.mxu0 0.0
        %403 = vmatpush.xpose.msra.mxu0 0.0
        %404 = vmatpush.xpose.msra.mxu0 0.0
        %405 = vmatpush.xpose.msra.mxu0 0.0
        %406 = vmatpush.xpose.msra.mxu0 0.0
        %407 = vmatpush.xpose.msra.mxu0 0.0
        %408 = vmatpush.xpose.msra.mxu0 0.0
        %409 = vmatpush.xpose.msra.mxu0 0.0
        %410 = vmatpush.xpose.msra.mxu0 0.0
        %411 = vmatpush.xpose.msra.mxu0 0.0
        %412 = vmatpush.xpose.msra.mxu0 0.0
        %413 = vmatpush.xpose.msra.mxu0 0.0
        %414 = vmatpush.xpose.msra.mxu0 %v397
        %415 = vmatmul.f32.gmra.mxu0 %v394
        %v416 = vpop.f32.mrf.mxu0
        %v417 = vadd.f32 0.0, %v416
        %418 = vdwg.mxu0
        %v420 = vsel %vm340, %v331, 0
        %v423 = vsel %vm340, %v335, 0
        %425 = vmatpush.xpose.msra.mxu0 0.0
        %426 = vmatpush.xpose.msra.mxu0 0.0
        %427 = vmatpush.xpose.msra.mxu0 0.0
        %428 = vmatpush.xpose.msra.mxu0 0.0
        %429 = vmatpush.xpose.msra.mxu0 0.0
        %430 = vmatpush.xpose.msra.mxu0 0.0
        %431 = vmatpush.xpose.msra.mxu0 0.0
        %432 = vmatpush.xpose.msra.mxu0 0.0
        %433 = vmatpush.xpose.msra.mxu0 0.0
        %434 = vmatpush.xpose.msra.mxu0 0.0
        %435 = vmatpush.xpose.msra.mxu0 0.0
        %436 = vmatpush.xpose.msra.mxu0 0.0
        %437 = vmatpush.xpose.msra.mxu0 0.0
        %438 = vmatpush.xpose.msra.mxu0 0.0
        %439 = vmatpush.xpose.msra.mxu0 0.0
        %440 = vmatpush.xpose.msra.mxu0 %v423
        %441 = vmatmul.f32.gmra.mxu0 %v420
        %v442 = vpop.f32.mrf.mxu0
        %v443 = vadd.f32 0.0, %v442
        %444 = vdwg.mxu0
        %v445 = vld [vmem:[#allocation2] sm:$0xff]
        %v446 = vld [vmem:[#allocation2 + $0x8] sm:$0xff]
        %v447 = vld [vmem:[#allocation2 + $0x10] sm:$0xff]
        %v448 = vld [vmem:[#allocation2 + $0x18] sm:$0xff]
        %vm449 = vcmask 64512
        %v450 = vsel %vm449, %v365, -inf
        %451 = vmax.xlane.f32.xlu0 %v450
        %v452 = vpop.xlane.xlu0 %451
        %v453 = vsel %vm449, %v391, -inf
        %454 = vmax.xlane.f32.xlu0 %v453
        %v455 = vpop.xlane.xlu0 %454
        %v456 = vsel %vm449, %v417, -inf
        %457 = vmax.xlane.f32.xlu0 %v456
        %v458 = vpop.xlane.xlu0 %457
        %v459 = vsel %vm449, %v443, -inf
        %460 = vmax.xlane.f32.xlu0 %v459
        %v461 = vpop.xlane.xlu0 %460
        %v462 = vmax.f32 %v445, %v452
        %v463 = vmax.f32 %v446, %v455
        %v464 = vmax.f32 %v447, %v458
        %v465 = vmax.f32 %v448, %v461
        %v466 = vsub.f32 %v445, %v462
        %v467 = vsub.f32 %v446, %v463
        %v468 = vsub.f32 %v447, %v464
        %v469 = vsub.f32 %v448, %v465
        %v470 = vmul.f32 %v466, 1.442695
        %v471 = vpow.pop %v470
        %v472 = vmul.f32 %v467, 1.442695
        %v473 = vpow.pop %v472
        %v474 = vmul.f32 %v468, 1.442695
        %v475 = vpow.pop %v474
        %v476 = vmul.f32 %v469, 1.442695
        %v477 = vpow.pop %v476
        %479 = vset.pattern.permute.xlu0 0
        %480 = vperm.xlu0 %479, %v462
        %v481 = vpop.permute.xlu0 %480
        %484 = vset.pattern.permute.xlu0 0
        %485 = vperm.xlu0 %484, %v463
        %v486 = vpop.permute.xlu0 %485
        %489 = vset.pattern.permute.xlu0 0
        %490 = vperm.xlu0 %489, %v464
        %v491 = vpop.permute.xlu0 %490
        %494 = vset.pattern.permute.xlu0 0
        %495 = vperm.xlu0 %494, %v465
        %v496 = vpop.permute.xlu0 %495
        %v498 = vsub.f32 %v365, %v481
        %v499 = vsub.f32 %v391, %v486
        %v500 = vsub.f32 %v417, %v491
        %v501 = vsub.f32 %v443, %v496
        %v502 = vmul.f32 %v498, 1.442695
        %v503 = vpow.pop %v502
        %v504 = vmul.f32 %v499, 1.442695
        %v505 = vpow.pop %v504
        %v506 = vmul.f32 %v500, 1.442695
        %v507 = vpow.pop %v506
        %v508 = vmul.f32 %v501, 1.442695
        %v509 = vpow.pop %v508
        %v510 = vld [vmem:[#allocation3] sm:$0xff]
        %v511 = vld [vmem:[#allocation3 + $0x8] sm:$0xff]
        %v512 = vld [vmem:[#allocation3 + $0x10] sm:$0xff]
        %v513 = vld [vmem:[#allocation3 + $0x18] sm:$0xff]
        %v514 = vmul.f32 %v471, %v510
        %v515 = vmul.f32 %v473, %v511
        %v516 = vmul.f32 %v475, %v512
        %v517 = vmul.f32 %v477, %v513
        %v518 = vsel %vm449, %v503, 0.0
        %519 = vadd.xlane.f32.xlu0 %v518
        %v520 = vpop.xlane.xlu0 %519
        %v521 = vsel %vm449, %v505, 0.0
        %522 = vadd.xlane.f32.xlu0 %v521
        %v523 = vpop.xlane.xlu0 %522
        %v524 = vsel %vm449, %v507, 0.0
        %525 = vadd.xlane.f32.xlu0 %v524
        %v526 = vpop.xlane.xlu0 %525
        %v527 = vsel %vm449, %v509, 0.0
        %528 = vadd.xlane.f32.xlu0 %v527
        %v529 = vpop.xlane.xlu0 %528
        %v530 = vadd.f32 %v514, %v520
        %v531 = vadd.f32 %v515, %v523
        %v532 = vadd.f32 %v516, %v526
        %v533 = vadd.f32 %v517, %v529
        %vm534 = vcmask 7168
        %535 = vst.msk [vmem:[#allocation3] sm:$0xff] %vm534, %v530
        %536 = vst.msk [vmem:[#allocation3 + $0x8] sm:$0xff] %vm534, %v531
        %537 = vst.msk [vmem:[#allocation3 + $0x10] sm:$0xff] %vm534, %v532
        %538 = vst.msk [vmem:[#allocation3 + $0x18] sm:$0xff] %vm534, %v533
        %v539 = vld [vmem:[#allocation4] sm:$0xff]
        %v540 = vld [vmem:[#allocation4 + $0x8] sm:$0xff]
        %v541 = vld [vmem:[#allocation4 + $0x10] sm:$0xff]
        %v542 = vld [vmem:[#allocation4 + $0x18] sm:$0xff]
        %544 = vset.pattern.permute.xlu0 0
        %545 = vperm.xlu0 %544, %v471
        %v546 = vpop.permute.xlu0 %545
        %549 = vset.pattern.permute.xlu0 0
        %550 = vperm.xlu0 %549, %v473
        %v551 = vpop.permute.xlu0 %550
        %554 = vset.pattern.permute.xlu0 0
        %555 = vperm.xlu0 %554, %v475
        %v556 = vpop.permute.xlu0 %555
        %559 = vset.pattern.permute.xlu0 0
        %560 = vperm.xlu0 %559, %v477
        %v561 = vpop.permute.xlu0 %560
        %v563 = vmul.f32 %v546, %v539
        %v564 = vmul.f32 %v551, %v540
        %v565 = vmul.f32 %v556, %v541
        %v566 = vmul.f32 %v561, %v542
        %v568 = vsel %vm449, %v503, 0
        %570 = vmatpush.msra.mxu0 0.0
        %571 = vmatpush.msra.mxu0 0.0
        %572 = vmatpush.msra.mxu0 0.0
        %573 = vmatpush.msra.mxu0 0.0
        %574 = vmatpush.msra.mxu0 0.0
        %575 = vmatpush.msra.mxu0 0.0
        %576 = vmatpush.msra.mxu0 0.0
        %577 = vmatpush.msra.mxu0 0.0
        %578 = vmatpush.msra.mxu0 0.0
        %579 = vmatpush.msra.mxu0 0.0
        %580 = vmatpush.msra.mxu0 0.0
        %581 = vmatpush.msra.mxu0 0.0
        %582 = vmatpush.msra.mxu0 0.0
        %583 = vmatpush.msra.mxu0 0.0
        %584 = vmatpush.msra.mxu0 0.0
        %585 = vmatpush.msra.mxu0 %v336
        %586 = vmatmul.f32.gmra.mxu0 %v568
        %v587 = vpop.f32.mrf.mxu0
        %v588 = vadd.f32 0.0, %v587
        %589 = vdwg.mxu0
        %v591 = vsel %vm449, %v505, 0
        %593 = vmatpush.msra.mxu0 0.0
        %594 = vmatpush.msra.mxu0 0.0
        %595 = vmatpush.msra.mxu0 0.0
        %596 = vmatpush.msra.mxu0 0.0
        %597 = vmatpush.msra.mxu0 0.0
        %598 = vmatpush.msra.mxu0 0.0
        %599 = vmatpush.msra.mxu0 0.0
        %600 = vmatpush.msra.mxu0 0.0
        %601 = vmatpush.msra.mxu0 0.0
        %602 = vmatpush.msra.mxu0 0.0
        %603 = vmatpush.msra.mxu0 0.0
        %604 = vmatpush.msra.mxu0 0.0
        %605 = vmatpush.msra.mxu0 0.0
        %606 = vmatpush.msra.mxu0 0.0
        %607 = vmatpush.msra.mxu0 0.0
        %608 = vmatpush.msra.mxu0 %v337
        %609 = vmatmul.f32.gmra.mxu0 %v591
        %v610 = vpop.f32.mrf.mxu0
        %v611 = vadd.f32 0.0, %v610
        %612 = vdwg.mxu0
        %v614 = vsel %vm449, %v507, 0
        %616 = vmatpush.msra.mxu0 0.0
        %617 = vmatpush.msra.mxu0 0.0
        %618 = vmatpush.msra.mxu0 0.0
        %619 = vmatpush.msra.mxu0 0.0
        %620 = vmatpush.msra.mxu0 0.0
        %621 = vmatpush.msra.mxu0 0.0
        %622 = vmatpush.msra.mxu0 0.0
        %623 = vmatpush.msra.mxu0 0.0
        %624 = vmatpush.msra.mxu0 0.0
        %625 = vmatpush.msra.mxu0 0.0
        %626 = vmatpush.msra.mxu0 0.0
        %627 = vmatpush.msra.mxu0 0.0
        %628 = vmatpush.msra.mxu0 0.0
        %629 = vmatpush.msra.mxu0 0.0
        %630 = vmatpush.msra.mxu0 0.0
        %631 = vmatpush.msra.mxu0 %v338
        %632 = vmatmul.f32.gmra.mxu0 %v614
        %v633 = vpop.f32.mrf.mxu0
        %v634 = vadd.f32 0.0, %v633
        %635 = vdwg.mxu0
        %v637 = vsel %vm449, %v509, 0
        %639 = vmatpush.msra.mxu0 0.0
        %640 = vmatpush.msra.mxu0 0.0
        %641 = vmatpush.msra.mxu0 0.0
        %642 = vmatpush.msra.mxu0 0.0
        %643 = vmatpush.msra.mxu0 0.0
        %644 = vmatpush.msra.mxu0 0.0
        %645 = vmatpush.msra.mxu0 0.0
        %646 = vmatpush.msra.mxu0 0.0
        %647 = vmatpush.msra.mxu0 0.0
        %648 = vmatpush.msra.mxu0 0.0
        %649 = vmatpush.msra.mxu0 0.0
        %650 = vmatpush.msra.mxu0 0.0
        %651 = vmatpush.msra.mxu0 0.0
        %652 = vmatpush.msra.mxu0 0.0
        %653 = vmatpush.msra.mxu0 0.0
        %654 = vmatpush.msra.mxu0 %v339
        %655 = vmatmul.f32.gmra.mxu0 %v637
        %v656 = vpop.f32.mrf.mxu0
        %v657 = vadd.f32 0.0, %v656
        %658 = vdwg.mxu0
        %v659 = vadd.f32 %v563, %v588
        %v660 = vadd.f32 %v564, %v611
        %v661 = vadd.f32 %v565, %v634
        %v662 = vadd.f32 %v566, %v657
        %663 = vst.msk [vmem:[#allocation4] sm:$0xff] %vm340, %v659
        %664 = vst.msk [vmem:[#allocation4 + $0x8] sm:$0xff] %vm340, %v660
        %665 = vst.msk [vmem:[#allocation4 + $0x10] sm:$0xff] %vm340, %v661
        %666 = vst.msk [vmem:[#allocation4 + $0x18] sm:$0xff] %vm340, %v662
        %667 = vst.msk [vmem:[#allocation2] sm:$0xff] %vm534, %v462
        %668 = vst.msk [vmem:[#allocation2 + $0x8] sm:$0xff] %vm534, %v463
        %669 = vst.msk [vmem:[#allocation2 + $0x10] sm:$0xff] %vm534, %v464
        %670 = vst.msk [vmem:[#allocation2 + $0x18] sm:$0xff] %vm534, %v465
        // Predicated region
        $region49: #{tpu_custom_call.1} parent=31 // pred_check
          %p671 = pneg %p306
        $region50: #{tpu_custom_call.1} parent=31 // pred_check_branch
          %673 = sbr.rel (%p671) target = $region52
        $region51: #{tpu_custom_call.1} parent=31 // pred_region
          %v674 = vld [vmem:[#allocation3] sm:$0xff]
          %v675 = vld [vmem:[#allocation3 + $0x8] sm:$0xff]
          %v676 = vld [vmem:[#allocation3 + $0x10] sm:$0xff]
          %v677 = vld [vmem:[#allocation3 + $0x18] sm:$0xff]
          %v678 = vrcp.pop %v674
          %v679 = vmul.f32 %v674, %v678
          %v680 = vsub.f32 1.0, %v679
          %v681 = vmul.f32 %v678, %v680
          %v682 = vadd.f32 %v678, %v681
          %vm683 = vweird.f32 %v674
          %vm684 = vweird.f32 %v678
          %vm685 = vmor %vm683, %vm684
          %v686 = vsel %vm685, %v678, %v682
          %v687 = vand.u32 2147483647, %v674
          %vm688 = vcmp.eq.f32.partialorder %v687, 8.507059e+37
          %v689 = vand.u32 %v674, 2147483648
          %v690 = vor.u32 1.1754944e-38, %v689
          %v691 = vsel %vm688, %v690, %v686
          %v692 = vrcp.pop %v675
          %v693 = vmul.f32 %v675, %v692
          %v694 = vsub.f32 1.0, %v693
          %v695 = vmul.f32 %v692, %v694
          %v696 = vadd.f32 %v692, %v695
          %vm697 = vweird.f32 %v675
          %vm698 = vweird.f32 %v692
          %vm699 = vmor %vm697, %vm698
          %v700 = vsel %vm699, %v692, %v696
          %v701 = vand.u32 2147483647, %v675
          %vm702 = vcmp.eq.f32.partialorder %v701, 8.507059e+37
          %v703 = vand.u32 %v675, 2147483648
          %v704 = vor.u32 1.1754944e-38, %v703
          %v705 = vsel %vm702, %v704, %v700
          %v706 = vrcp.pop %v676
          %v707 = vmul.f32 %v676, %v706
          %v708 = vsub.f32 1.0, %v707
          %v709 = vmul.f32 %v706, %v708
          %v710 = vadd.f32 %v706, %v709
          %vm711 = vweird.f32 %v676
          %vm712 = vweird.f32 %v706
          %vm713 = vmor %vm711, %vm712
          %v714 = vsel %vm713, %v706, %v710
          %v715 = vand.u32 2147483647, %v676
          %vm716 = vcmp.eq.f32.partialorder %v715, 8.507059e+37
          %v717 = vand.u32 %v676, 2147483648
          %v718 = vor.u32 1.1754944e-38, %v717
          %v719 = vsel %vm716, %v718, %v714
          %v720 = vrcp.pop %v677
          %v721 = vmul.f32 %v677, %v720
          %v722 = vsub.f32 1.0, %v721
          %v723 = vmul.f32 %v720, %v722
          %v724 = vadd.f32 %v720, %v723
          %vm725 = vweird.f32 %v677
          %vm726 = vweird.f32 %v720
          %vm727 = vmor %vm725, %vm726
          %v728 = vsel %vm727, %v720, %v724
          %v729 = vand.u32 2147483647, %v677
          %vm730 = vcmp.eq.f32.partialorder %v729, 8.507059e+37
          %v731 = vand.u32 %v677, 2147483648
          %v732 = vor.u32 1.1754944e-38, %v731
          %v733 = vsel %vm730, %v732, %v728
          %v734 = vld [vmem:[#allocation4] sm:$0xff]
          %v735 = vld [vmem:[#allocation4 + $0x8] sm:$0xff]
          %v736 = vld [vmem:[#allocation4 + $0x10] sm:$0xff]
          %v737 = vld [vmem:[#allocation4 + $0x18] sm:$0xff]
          %739 = vset.pattern.permute.xlu0 0
          %740 = vperm.xlu0 %739, %v691
          %v741 = vpop.permute.xlu0 %740
          %744 = vset.pattern.permute.xlu0 0
          %745 = vperm.xlu0 %744, %v705
          %v746 = vpop.permute.xlu0 %745
          %749 = vset.pattern.permute.xlu0 0
          %750 = vperm.xlu0 %749, %v719
          %v751 = vpop.permute.xlu0 %750
          %754 = vset.pattern.permute.xlu0 0
          %755 = vperm.xlu0 %754, %v733
          %v756 = vpop.permute.xlu0 %755
          %v758 = vmul.f32 %v734, %v741
          %v759 = vmul.f32 %v735, %v746
          %v760 = vmul.f32 %v736, %v751
          %v761 = vmul.f32 %v737, %v756
          %762 = vst.msk [vmem:[%s301] sm:$0xff] %vm340, %v758
          %763 = vst.msk [vmem:[%s301 + $0x8] sm:$0xff] %vm340, %v759
          %764 = vst.msk [vmem:[%s301 + $0x10] sm:$0xff] %vm340, %v760
          %765 = vst.msk [vmem:[%s301 + $0x18] sm:$0xff] %vm340, %v761
        $region52: #{tpu_custom_call.1} parent=31 // pred_fallthru
          _
        %s766 = sand.u32 %s136, 1
        %s767 = scalar_lea.sflag [#allocation7], %s766
        %s768 = sand.u32 %s136, 1
        %s769 = smul.addr %s768, 32
        %s770 = scalar_lea.vmem [#allocation11], %s769
        // Predicated region
        $region53: #{tpu_custom_call.1} parent=31 // pred_check
          %p771 = pneg %p146
        $region54: #{tpu_custom_call.1} parent=31 // pred_check_branch
          %773 = sbr.rel (%p771) target = $region56
        $region55: #{tpu_custom_call.1} parent=31 // pred_region
          %s774 = smul.u32 4, %s28
          %776 = vsyncadd %s767, 0
          %s777 = sadd.s32 %s29, %s774
          %s778 = smul.addr %s777, 8
          %s779 = scalar_lea.hbm %s3, %s778
          %s780 = sshll.u32 %s770, 4
          %s781 = int_to_ptr.vmem [resolvable:$true] %s780
          %s782 = sshll.u32 %s779, 4
          %s783 = int_to_ptr.hbm [resolvable:$true] %s782
          %788 = dma.vmem_to_hbm [thread:$0]  %s781, 512, %s783, %s767, 128, 128, 8
        $region56: #{tpu_custom_call.1} parent=31 // pred_fallthru
          _
      $region32: #{tpu_custom_call.1} parent=5 // pred_fallthru
        _
      %p789 = scmp.le.s32.totalorder 2, %s18
      // Predicated region
      $region57: #{tpu_custom_call.1} parent=5 // pred_check
        %p790 = pneg %p789
      $region58: #{tpu_custom_call.1} parent=5 // pred_check_branch
        %792 = sbr.rel (%p790) target = $region60
      $region59: #{tpu_custom_call.1} parent=5 // pred_region
        %s793 = ssub.s32 %s18, 2
        // Predicated region
        $region61: #{tpu_custom_call.1} parent=59 // pred_check
          %p794 = pneg %p152
        $region62: #{tpu_custom_call.1} parent=59 // pred_check_branch
          %796 = sbr.rel (%p794) target = $region64
        $region63: #{tpu_custom_call.1} parent=59 // pred_region
          %s797 = sand.u32 %s137, 1
          %s798 = scalar_lea.sflag [#allocation7], %s797
          %s799 = sand.u32 %s137, 1
          %s800 = smul.addr %s799, 32
          %s801 = scalar_lea.vmem [#allocation11], %s800
          %803 = dma.done %s798, 512
        $region64: #{tpu_custom_call.1} parent=59 // pred_fallthru
          _
      $region60: #{tpu_custom_call.1} parent=5 // pred_fallthru
        _
    $region6: #{tpu_custom_call.1} parent=1 // loop_footer
      %s22 = sadd.s32 1, %s18
    $region7: #{tpu_custom_call.1} parent=1 // loop_footer_branch
      %17 = sbr.rel target = $region3
    $region8: #{tpu_custom_call.1} parent=1 // loop_exit
      _
    %804 = vsyncpa [#allocation6], 1
    %s805 = scalar_lea.sflag [#allocation6], 1
    %806 = vsyncpa %s805, 1
    %807 = vsyncpa [#allocation9], 1
    %s808 = scalar_lea.sflag [#allocation9], 1
    %809 = vsyncpa %s808, 1
    %810 = vsyncpa [#allocation7], 1
    %s811 = scalar_lea.sflag [#allocation7], 1
    %812 = vsyncpa %s811, 1

</llo_original>
